<compile_context>
chip_gen: v7x
topology: tpu7x:2x2x1
jax: 0.10.0
libtpu: 0.0.40
codegen_flags: <defaults>
</compile_context>

<pallas_src>
import functools

import jax
import jax.numpy as jnp
from jax import lax
from jax.experimental import pallas as pl
from jax.experimental.pallas import tpu as pltpu  # noqa: F401  (TPU backend)

_LANE = 128      # vreg lane width
_SUBLANE = 8     # vreg sublane count (f32)


def _round_up(n, m):
    return (n + m - 1) // m * m


def va_net_kernel(x_ref, p_ref, q_ref, *, out_dim, inv_count,
                  rows_w1, rows_wav, off_b1, off_wav, off_bav):
    x = x_ref[...]                                    # (B, D_pad), D_pad = rows_w1

    # Static, sublane-aligned, full-lane views of the single packed buffer.
    w1 = p_ref[0:rows_w1, :]                          # (rows_w1, 128)   fc1 weight
    b1 = p_ref[off_b1:off_b1 + 1, :]                  # (1, 128)         fc1 bias
    wav = p_ref[off_wav:off_wav + rows_wav, :]        # (rows_wav, 128)  [wA | wV]
    bav = p_ref[off_bav:off_bav + 1, :]               # (1, 128)         [bA | bV]

    # Shared trunk: fc1 + ReLU (computed once, used by both heads).
    # Lanes >= hidden are exactly zero (zero weight cols + zero bias -> relu 0).
    h = jnp.maximum(
        jnp.dot(x, w1, preferred_element_type=jnp.float32) + b1, 0.0)   # (B, 128)

    # Fused A/V head: one MXU matmul, contracting only the packed hidden rows.
    av = jnp.dot(h[:, 0:rows_wav], wav,
                 preferred_element_type=jnp.float32) + bav              # (B, 128)

    # Whole-vreg mask math (no narrow lane slices):
    #   lanes [0, out_dim) of av hold A;  lane out_dim holds V.
    col = lax.broadcasted_iota(jnp.int32, av.shape, 1)                  # (B, 128)
    a_sum = jnp.sum(jnp.where(col < out_dim, av, 0.0))                  # scalar sum(A)
    mean_a = a_sum * inv_count                       # * 1/(B*O), compile-time const
    v = jnp.sum(jnp.where(col == out_dim, av, 0.0),
                axis=1, keepdims=True)                                  # (B, 1)

    # Lane-dense, unmasked full-width store; the wrapper slices [:, :out_dim].
    # (Padded lanes hold V - mean(A) junk, discarded by the wrapper.)
    q_ref[...] = (av + (v - mean_a)).astype(q_ref.dtype)


def init_params(key, input_dim, hidden_dim, output_dim):
    """Deterministic synthetic init (PyTorch-Linear-like uniform bounds).

    Weights stored as (in, out) so the kernel computes x @ W directly.
    """
    ks = jax.random.split(key, 6)

    def linear(kw, kb, fan_in, fan_out):
        bound = 1.0 / jnp.sqrt(fan_in)
        w = jax.random.uniform(kw, (fan_in, fan_out), jnp.float32, -bound, bound)
        b = jax.random.uniform(kb, (1, fan_out), jnp.float32, -bound, bound)
        return w, b

    w1, b1 = linear(ks[0], ks[1], input_dim, hidden_dim)
    wA, bA = linear(ks[2], ks[3], hidden_dim, output_dim)
    wV, bV = linear(ks[4], ks[5], hidden_dim, 1)
    return {"w1": w1, "b1": b1, "wA": wA, "bA": bA, "wV": wV, "bV": bV}


def pack_params(params):
    """Pack all parameters into one (rows, 128) f32 buffer (done once).

    Layout (every segment start is a multiple of 8 rows, every segment spans
    the full 128 lanes, padding is zero):
      rows [0, rows_w1)               : w1       at [0:d_in, 0:H]
      rows [off_b1,  off_b1  + 8)     : b1       at [off_b1, 0:H]
      rows [off_wav, off_wav + rows_wav): [wA|wV] at [off_wav:off_wav+H, 0:O+1]
      rows [off_bav, off_bav + 8)     : [bA|bV]  at [off_bav, 0:O+1]
    """
    w1, b1 = params["w1"], params["b1"]     # (D_in, H), (1, H)
    wA, bA = params["wA"], params["bA"]     # (H, O),    (1, O)
    wV, bV = params["wV"], params["bV"]     # (H, 1),    (1, 1)
    d_in, hidden = w1.shape
    out_dim = wA.shape[1]
    assert hidden <= _LANE and out_dim + 1 <= _LANE, (
        "single-lane-tile packing assumes hidden <= 128 and O+1 <= 128")

    wav = jnp.concatenate([wA, wV], axis=1)          # (H, O+1) fused head weight
    bav = jnp.concatenate([bA, bV], axis=1)          # (1, O+1) fused head bias

    def seg(a, rows):
        r, c = a.shape
        return jnp.pad(a, ((0, rows - r), (0, _LANE - c)))

    rows_w1 = _round_up(d_in, _SUBLANE)
    rows_wav = _round_up(hidden, _SUBLANE)
    off_b1 = rows_w1
    off_wav = off_b1 + _SUBLANE
    off_bav = off_wav + rows_wav
    # TODO(synk): store as bf16 on v6e/v7x to halve the weight DMA (keep
    # preferred_element_type=f32); kept f32 here to match the f32 reference.
    packed = jnp.concatenate(
        [seg(w1, rows_w1), seg(b1, _SUBLANE), seg(wav, rows_wav),
         seg(bav, _SUBLANE)], axis=0).astype(jnp.float32)

    meta = dict(d_in=d_in, d_pad=rows_w1, hidden=hidden, out_dim=out_dim,
                rows_w1=rows_w1, rows_wav=rows_wav,
                off_b1=off_b1, off_wav=off_wav, off_bav=off_bav)
    return packed, meta


def va_net_forward(x, packed, meta):
    """x: (B, input_dim) f32. packed/meta: from pack_params (built once)."""
    B = x.shape[0]
    d_in, d_pad, out_dim = meta["d_in"], meta["d_pad"], meta["out_dim"]

    # Zero-pad the feature dim to a full sublane tile; padded columns meet
    # zero weight rows, so the result is unchanged.
    if d_in != d_pad:
        x = jnp.pad(x, ((0, 0), (0, d_pad - d_in)))

    kernel = functools.partial(
        va_net_kernel, out_dim=out_dim, inv_count=1.0 / float(B * out_dim),
        rows_w1=meta["rows_w1"], rows_wav=meta["rows_wav"],
        off_b1=meta["off_b1"], off_wav=meta["off_wav"], off_bav=meta["off_bav"])

    full = lambda shape: pl.BlockSpec(shape, lambda: (0,) * len(shape))

    cost = pl.CostEstimate(
        flops=2 * B * (d_pad * _LANE + meta["rows_wav"] * _LANE),
        transcendentals=0,
        bytes_accessed=int(x.size + packed.size + B * _LANE) * 4)

    # grid=(): the whole batch is processed in one step so the GLOBAL mean(A)
    # stays exact (torch's A.mean().item()), with exactly two input DMAs.
    # TODO(synk): for large batches, use a 1-D "parallel" batch grid with
    # VMEM-resident weights and a two-pass / pl.when-finalize cross-tile
    # mean(A); on v7x that also unlocks the second TensorCore.
    # TODO(synk): weights are constant over an RL rollout — persist `packed`
    # in VMEM across calls (cross-pallas_call future pattern, P10) to remove
    # the per-call weight DMA entirely.
    q_full = pl.pallas_call(
        kernel,
        out_shape=jax.ShapeDtypeStruct((B, _LANE), jnp.float32),
        grid=(),
        in_specs=[full(x.shape), full(packed.shape)],
        out_specs=full((B, _LANE)),
        cost_estimate=cost,
    )(x, packed)

    # Lane-dense kernel output; only the first out_dim lanes are meaningful.
    return q_full[:, :out_dim]


def va_net_reference(x, p):
    """Pure-JAX reference matching the PyTorch forward (unpacked params)."""
    h = jnp.maximum(x @ p["w1"] + p["b1"], 0.0)
    a = h @ p["wA"] + p["bA"]
    v = h @ p["wV"] + p["bV"]
    return v + a - jnp.mean(a)


if __name__ == "__main__":
    # RollingBall-style small shapes: obs dim 4, hidden 32, 5 actions, batch 8.
    batch, input_dim, hidden_dim, output_dim = 8, 4, 32, 5

    key = jax.random.PRNGKey(0)
    kx, kp = jax.random.split(key)
    x = jax.random.normal(kx, (batch, input_dim), jnp.float32)
    params = init_params(kp, input_dim, hidden_dim, output_dim)
    packed, meta = pack_params(params)   # one-time packing into a single buffer

    q = va_net_forward(x, packed, meta)
    jax.block_until_ready(q)

    q_ref = va_net_reference(x, params)
    assert q.shape == (batch, output_dim)
    assert jnp.allclose(q, q_ref, atol=1e-5, rtol=1e-5), "mismatch vs reference"

    print("KERNEL_OK")
</pallas_src>

<mosaic_0001>
module attributes {stable_mosaic.version = 11 : i64} {
  func.func @va_net_kernel(%arg0: memref<8x8xf32, #tpu.memory_space<vmem>>, %arg1: memref<56x128xf32, #tpu.memory_space<vmem>>, %arg2: memref<8x128xf32, #tpu.memory_space<vmem>>) attributes {dimension_semantics = [], scalar_prefetch = 0 : i64, scratch_operands = 0 : i64, tpu.core_type = #tpu.core_type<tc>} {
    %c0 = arith.constant 0 : index
    %c0_0 = arith.constant 0 : index
    %0 = vector.load %arg0[%c0, %c0_0] : memref<8x8xf32, #tpu.memory_space<vmem>>, vector<8x8xf32>
    %c0_1 = arith.constant 0 : index
    %c0_2 = arith.constant 0 : index
    %1 = vector.load %arg1[%c0_1, %c0_2] : memref<56x128xf32, #tpu.memory_space<vmem>>, vector<8x128xf32>
    %c8 = arith.constant 8 : index
    %c0_3 = arith.constant 0 : index
    %2 = vector.load %arg1[%c8, %c0_3] : memref<56x128xf32, #tpu.memory_space<vmem>>, vector<1x128xf32>
    %c16 = arith.constant 16 : index
    %c0_4 = arith.constant 0 : index
    %3 = vector.load %arg1[%c16, %c0_4] : memref<56x128xf32, #tpu.memory_space<vmem>>, vector<32x128xf32>
    %c48 = arith.constant 48 : index
    %c0_5 = arith.constant 0 : index
    %4 = vector.load %arg1[%c48, %c0_5] : memref<56x128xf32, #tpu.memory_space<vmem>>, vector<1x128xf32>
    %cst = arith.constant dense<0.000000e+00> : vector<8x128xf32>
    %5 = tpu.matmul %0, %1, %cst {dimension_numbers = #tpu.dot_dimension_numbers<[1], [0], [0], [1], [0, 0, 1, 1], [], []>} : vector<8x8xf32>, vector<8x128xf32>, vector<8x128xf32> -> vector<8x128xf32>
    %6 = vector.broadcast %2 : vector<1x128xf32> to vector<8x128xf32>
    %7 = arith.addf %5, %6 : vector<8x128xf32>
    %cst_6 = arith.constant 0.000000e+00 : f32
    %8 = vector.broadcast %cst_6 : f32 to vector<8x128xf32>
    %9 = arith.maximumf %7, %8 : vector<8x128xf32>
    %10 = vector.extract_strided_slice %9 {offsets = [0, 0], sizes = [8, 32], strides = [1, 1]} : vector<8x128xf32> to vector<8x32xf32>
    %cst_7 = arith.constant dense<0.000000e+00> : vector<8x128xf32>
    %11 = tpu.matmul %10, %3, %cst_7 {dimension_numbers = #tpu.dot_dimension_numbers<[1], [0], [0], [1], [0, 0, 1, 1], [], []>} : vector<8x32xf32>, vector<32x128xf32>, vector<8x128xf32> -> vector<8x128xf32>
    %12 = vector.broadcast %4 : vector<1x128xf32> to vector<8x128xf32>
    %13 = arith.addf %11, %12 : vector<8x128xf32>
    %14 = tpu.iota {dimensions = array<i32: 1>} : vector<8x128xi32>
    %c5_i32 = arith.constant 5 : i32
    %15 = vector.broadcast %c5_i32 : i32 to vector<8x128xi32>
    %16 = arith.cmpi slt, %14, %15 : vector<8x128xi32>
    %cst_8 = arith.constant 0.000000e+00 : f32
    %17 = vector.broadcast %cst_8 : f32 to vector<8x128xf32>
    %18 = arith.select %16, %13, %17 : vector<8x128xi1>, vector<8x128xf32>
    %19 = vector.shape_cast %18 : vector<8x128xf32> to vector<1x8x128xf32>
    %cst_9 = arith.constant dense<0.000000e+00> : vector<1xf32>
    %20 = vector.multi_reduction <add>, %19, %cst_9 [1, 2] : vector<1x8x128xf32> to vector<1xf32>
    %21 = vector.shape_cast %20 : vector<1xf32> to vector<1x1x1xf32>
    %22 = vector.extract %21[0, 0, 0] : f32 from vector<1x1x1xf32>
    %cst_10 = arith.constant 2.500000e-02 : f32
    %23 = arith.mulf %22, %cst_10 : f32
    %c5_i32_11 = arith.constant 5 : i32
    %24 = vector.broadcast %c5_i32_11 : i32 to vector<8x128xi32>
    %25 = arith.cmpi eq, %14, %24 : vector<8x128xi32>
    %cst_12 = arith.constant 0.000000e+00 : f32
    %26 = vector.broadcast %cst_12 : f32 to vector<8x128xf32>
    %27 = arith.select %25, %13, %26 : vector<8x128xi1>, vector<8x128xf32>
    %cst_13 = arith.constant dense<0.000000e+00> : vector<8xf32>
    %28 = vector.multi_reduction <add>, %27, %cst_13 [1] : vector<8x128xf32> to vector<8xf32>
    %29 = vector.shape_cast %28 : vector<8xf32> to vector<8x1xf32>
    %30 = vector.broadcast %23 : f32 to vector<8x1xf32>
    %31 = arith.subf %29, %30 : vector<8x1xf32>
    %32 = vector.broadcast %31 : vector<8x1xf32> to vector<8x128xf32>
    %33 = arith.addf %13, %32 : vector<8x128xf32>
    %c0_14 = arith.constant 0 : index
    %c0_15 = arith.constant 0 : index
    %34 = vector.load %arg2[%c0_14, %c0_15] : memref<8x128xf32, #tpu.memory_space<vmem>>, vector<8x128xf32>
    tpu.vector_store %arg2[%c0_14, %c0_15], %33 {strides = array<i32>} : memref<8x128xf32, #tpu.memory_space<vmem>>, vector<8x128xf32>,
    return
  }
}

</mosaic_0001>

<llo_original>
// kernel: tpu_custom_call.1
$region0: #{tpu_custom_call.1}
  #allocation0 [shape = 'u32[]', space=smem, size = 0x4, offset = 0x4, fixed_abs, tag = 'smem constant byte address 0x4 - core index']
  #allocation1 [shape = 'u32[144,128]{1,0:T(1,128)}', space=vmem, size = 0x12000, scoped, tag = 'internal scratch']
  %s0 = inlined_call_operand.hbm [shape: f32[8,8], index: 0, kind: input, shape index: {}]
  %s1 = inlined_call_operand.hbm [shape: f32[56,128], index: 1, kind: input, shape index: {}]
  %s2 = inlined_call_operand.hbm [shape: f32[8,128], index: 2, kind: output, shape index: {}]
  %s3 = sld [smem:[#allocation0]]
  $region26: #{tpu_custom_call.1} parent=0
    _
  %s5 = ssub.s32 1, %s3
  %s6 = scalar_select 0, %s5, %s3
  $region1: #{tpu_custom_call.1} parent=0
    #allocation2 [shape = 'u8[4096]{0}', space=vmem, size = 0x1000, scoped, tag = 'input window, operand 0, single buffered']
    #allocation3 [shape = 's32[1]{0}', space=sflag, size = 0x4, scoped, tag = 'scoped memory for tpu_custom_call.1']
    #allocation4 [shape = 's32[1]{0}', space=sflag, size = 0x4, scoped, tag = 'scoped memory for tpu_custom_call.1']
    #allocation5 [shape = 'u8[28672]{0}', space=vmem, size = 0x7000, scoped, tag = 'input window, operand 1, single buffered']
    #allocation6 [shape = 's32[1]{0}', space=sflag, size = 0x4, scoped, tag = 'scoped memory for tpu_custom_call.1']
    #allocation7 [shape = 'u8[4096]{0}', space=vmem, size = 0x1000, scoped, tag = 'output window, operand 0, single buffered']
    %7 = vsyncpa [#allocation3], 0
    %8 = vsyncpa [#allocation6], 0
    %9 = vsyncpa [#allocation4], 0
    // Predicated region
    $region2: #{tpu_custom_call.1} parent=1 // pred_check
      _
    $region3: #{tpu_custom_call.1} parent=1 // pred_check_branch
      %11 = sbr.rel (0) target = $region5
    $region4: #{tpu_custom_call.1} parent=1 // pred_region
      %s13 = ssub.s32 128, 128
      %14 = vsyncadd [#allocation3], %s13
      %s16 = sshll.u32 [#allocation2], 4
      %s17 = int_to_ptr.vmem [resolvable:$true] %s16
      %19 = dma.hbm_to_vmem [thread:$0]  %s0, 128, %s17, [#allocation3]
    $region5: #{tpu_custom_call.1} parent=1 // pred_fallthru
      _
    // Predicated region
    $region6: #{tpu_custom_call.1} parent=1 // pred_check
      _
    $region7: #{tpu_custom_call.1} parent=1 // pred_check_branch
      %21 = sbr.rel (0) target = $region9
    $region8: #{tpu_custom_call.1} parent=1 // pred_region
      %s23 = ssub.s32 896, 896
      %24 = vsyncadd [#allocation6], %s23
      %s25 = sshll.u32 [#allocation5], 4
      %s26 = int_to_ptr.vmem [resolvable:$true] %s25
      %31 = dma.hbm_to_vmem [thread:$0]  %s1, 896, %s26, [#allocation6], 128, 128, 8
    $region9: #{tpu_custom_call.1} parent=1 // pred_fallthru
      _
    // Predicated region
    $region10: #{tpu_custom_call.1} parent=1 // pred_check
      _
    $region11: #{tpu_custom_call.1} parent=1 // pred_check_branch
      %33 = sbr.rel (0) target = $region13
    $region12: #{tpu_custom_call.1} parent=1 // pred_region
      %34 = dma.done [#allocation3], 128
    $region13: #{tpu_custom_call.1} parent=1 // pred_fallthru
      _
    // Predicated region
    $region14: #{tpu_custom_call.1} parent=1 // pred_check
      _
    $region15: #{tpu_custom_call.1} parent=1 // pred_check_branch
      %36 = sbr.rel (0) target = $region17
    $region16: #{tpu_custom_call.1} parent=1 // pred_region
      %37 = dma.done [#allocation6], 896
    $region17: #{tpu_custom_call.1} parent=1 // pred_fallthru
      _
    %v38 = vld [vmem:[#allocation2] sm:$0xff]
    %v39 = vld [vmem:[#allocation5] sm:$0xff]
    %v40 = vld [vmem:[#allocation5 + $0x8] sm:$0x1]
    %v41 = vld [vmem:[#allocation5 + $0x10] sm:$0xff]
    %v42 = vld [vmem:[#allocation5 + $0x18] sm:$0xff]
    %v43 = vld [vmem:[#allocation5 + $0x20] sm:$0xff]
    %v44 = vld [vmem:[#allocation5 + $0x28] sm:$0xff]
    %v45 = vld [vmem:[#allocation5 + $0x30] sm:$0x1]
    %v46 = vlaneseq
    %v47 = vshrl.u32 %v46, 7
    %v48 = vsub.s32 0, %v47
    %v49 = vrot.slane %v40, %v48
    %vm50 = vcmask 64512
    %v52 = vsel %vm50, %v38, 0
    %54 = vmatprep.subr.mxu0 0.0
    %55 = vmatpush1.msra.mxu0 %v39
    %56 = vmatprep.subr.mxu0 0.0
    %57 = vmatpush1.msra.mxu0 0.0
    %58 = vmatprep.subr.mxu0 0.0
    %59 = vmatpush1.msra.mxu0 0.0
    %60 = vmatprep.subr.mxu0 0.0
    %61 = vmatpush1.msra.mxu0 0.0
    %62 = vmatprep.subr.mxu0 0.0
    %63 = vmatpush1.msra.mxu0 0.0
    %64 = vmatprep.subr.mxu0 0.0
    %65 = vmatpush1.msra.mxu0 0.0
    %66 = vmatprep.subr.mxu0 0.0
    %67 = vmatpush1.msra.mxu0 0.0
    %68 = vmatprep.subr.mxu0 0.0
    %69 = vmatpush1.msra.mxu0 0.0
    %70 = vmatprep.subr.mxu0 0.0
    %71 = vmatpush1.msra.mxu0 0.0
    %72 = vmatprep.subr.mxu0 0.0
    %73 = vmatpush1.msra.mxu0 0.0
    %74 = vmatprep.subr.mxu0 0.0
    %75 = vmatpush1.msra.mxu0 0.0
    %76 = vmatprep.subr.mxu0 0.0
    %77 = vmatpush1.msra.mxu0 0.0
    %78 = vmatprep.subr.mxu0 0.0
    %79 = vmatpush1.msra.mxu0 0.0
    %80 = vmatprep.subr.mxu0 0.0
    %81 = vmatpush1.msra.mxu0 0.0
    %82 = vmatprep.subr.mxu0 0.0
    %83 = vmatpush1.msra.mxu0 0.0
    %84 = vmatprep.subr.mxu0 0.0
    %85 = vmatpush1.msra.mxu0 0.0
    %86 = vmatprep.subr.mxu0 0.0
    %87 = vmatpush1.msra.mxu0 0.0
    %88 = vmatprep.subr.mxu0 0.0
    %89 = vmatpush1.msra.mxu0 0.0
    %90 = vmatprep.subr.mxu0 0.0
    %91 = vmatpush1.msra.mxu0 0.0
    %92 = vmatprep.subr.mxu0 0.0
    %93 = vmatpush1.msra.mxu0 0.0
    %94 = vmatprep.subr.mxu0 0.0
    %95 = vmatpush1.msra.mxu0 0.0
    %96 = vmatprep.subr.mxu0 0.0
    %97 = vmatpush1.msra.mxu0 0.0
    %98 = vmatprep.subr.mxu0 0.0
    %99 = vmatpush1.msra.mxu0 0.0
    %100 = vmatprep.subr.mxu0 0.0
    %101 = vmatpush1.msra.mxu0 0.0
    %102 = vmatprep.subr.mxu0 0.0
    %103 = vmatpush1.msra.mxu0 0.0
    %104 = vmatprep.subr.mxu0 0.0
    %105 = vmatpush1.msra.mxu0 0.0
    %106 = vmatprep.subr.mxu0 0.0
    %107 = vmatpush1.msra.mxu0 0.0
    %108 = vmatprep.subr.mxu0 0.0
    %109 = vmatpush1.msra.mxu0 0.0
    %110 = vmatprep.subr.mxu0 0.0
    %111 = vmatpush1.msra.mxu0 0.0
    %112 = vmatprep.subr.mxu0 0.0
    %113 = vmatpush1.msra.mxu0 0.0
    %114 = vmatprep.subr.mxu0 0.0
    %115 = vmatpush1.msra.mxu0 0.0
    %116 = vmatprep.subr.mxu0 0.0
    %117 = vmatpush1.msra.mxu0 0.0
    %118 = vmatprep.mubr.f32.mxu0 0.0
    %119 = vmatmul.mubr.f32.gmra.mrb[0].mxu0 %v52
    %v120 = vpop.f32.mrb[0].mxu0
    %v121 = vadd.f32 %v49, %v120
    %v122 = vpop.f32.mrb[0].mxu0
    %123 = vdwg.mxu0
    %v124 = vmax.f32 %v121, 0.0
    %v125 = vlaneseq
    %v126 = vshrl.u32 %v125, 7
    %v127 = vsub.s32 0, %v126
    %v128 = vrot.slane %v45, %v127
    %vm129 = vcmask 261120
    %v131 = vsel %vm129, %v124, 0
    %133 = vmatprep.subr.mxu0 0.0
    %134 = vmatpush1.msra.mxu0 %v41
    %135 = vmatprep.subr.mxu0 0.0
    %136 = vmatpush1.msra.mxu0 %v42
    %137 = vmatprep.subr.mxu0 0.0
    %138 = vmatpush1.msra.mxu0 %v43
    %139 = vmatprep.subr.mxu0 0.0
    %140 = vmatpush1.msra.mxu0 %v44
    %141 = vmatprep.subr.mxu0 0.0
    %142 = vmatpush1.msra.mxu0 0.0
    %143 = vmatprep.subr.mxu0 0.0
    %144 = vmatpush1.msra.mxu0 0.0
    %145 = vmatprep.subr.mxu0 0.0
    %146 = vmatpush1.msra.mxu0 0.0
    %147 = vmatprep.subr.mxu0 0.0
    %148 = vmatpush1.msra.mxu0 0.0
    %149 = vmatprep.subr.mxu0 0.0
    %150 = vmatpush1.msra.mxu0 0.0
    %151 = vmatprep.subr.mxu0 0.0
    %152 = vmatpush1.msra.mxu0 0.0
    %153 = vmatprep.subr.mxu0 0.0
    %154 = vmatpush1.msra.mxu0 0.0
    %155 = vmatprep.subr.mxu0 0.0
    %156 = vmatpush1.msra.mxu0 0.0
    %157 = vmatprep.subr.mxu0 0.0
    %158 = vmatpush1.msra.mxu0 0.0
    %159 = vmatprep.subr.mxu0 0.0
    %160 = vmatpush1.msra.mxu0 0.0
    %161 = vmatprep.subr.mxu0 0.0
    %162 = vmatpush1.msra.mxu0 0.0
    %163 = vmatprep.subr.mxu0 0.0
    %164 = vmatpush1.msra.mxu0 0.0
    %165 = vmatprep.subr.mxu0 0.0
    %166 = vmatpush1.msra.mxu0 0.0
    %167 = vmatprep.subr.mxu0 0.0
    %168 = vmatpush1.msra.mxu0 0.0
    %169 = vmatprep.subr.mxu0 0.0
    %170 = vmatpush1.msra.mxu0 0.0
    %171 = vmatprep.subr.mxu0 0.0
    %172 = vmatpush1.msra.mxu0 0.0
    %173 = vmatprep.subr.mxu0 0.0
    %174 = vmatpush1.msra.mxu0 0.0
    %175 = vmatprep.subr.mxu0 0.0
    %176 = vmatpush1.msra.mxu0 0.0
    %177 = vmatprep.subr.mxu0 0.0
    %178 = vmatpush1.msra.mxu0 0.0
    %179 = vmatprep.subr.mxu0 0.0
    %180 = vmatpush1.msra.mxu0 0.0
    %181 = vmatprep.subr.mxu0 0.0
    %182 = vmatpush1.msra.mxu0 0.0
    %183 = vmatprep.subr.mxu0 0.0
    %184 = vmatpush1.msra.mxu0 0.0
    %185 = vmatprep.subr.mxu0 0.0
    %186 = vmatpush1.msra.mxu0 0.0
    %187 = vmatprep.subr.mxu0 0.0
    %188 = vmatpush1.msra.mxu0 0.0
    %189 = vmatprep.subr.mxu0 0.0
    %190 = vmatpush1.msra.mxu0 0.0
    %191 = vmatprep.subr.mxu0 0.0
    %192 = vmatpush1.msra.mxu0 0.0
    %193 = vmatprep.subr.mxu0 0.0
    %194 = vmatpush1.msra.mxu0 0.0
    %195 = vmatprep.subr.mxu0 0.0
    %196 = vmatpush1.msra.mxu0 0.0
    %197 = vmatprep.mubr.f32.mxu0 0.0
    %198 = vmatmul.mubr.f32.gmra.mrb[0].mxu0 %v131
    %v199 = vpop.f32.mrb[0].mxu0
    %v200 = vadd.f32 %v128, %v199
    %v201 = vpop.f32.mrb[0].mxu0
    %202 = vdwg.mxu0
    %v203 = vlaneseq
    %v204 = vand.u32 %v203, 127
    %vm205 = vcmp.lt.s32.totalorder %v204, 5
    %v206 = vsel %vm205, %v200, 0.0
    %207 = vadd.xlane.f32.xlu0 %v206
    %v208 = vpop.xlane.xlu0 %207
    %v209 = vrot.slane %v208, 4
    %v210 = vadd.f32 %v208, %v209
    %v211 = vrot.slane %v210, 2
    %v212 = vadd.f32 %v210, %v211
    %v213 = vrot.slane %v212, 1
    %v214 = vadd.f32 %v212, %v213
    %s215 = vtos %v214
    %s216 = smul.f32 %s215, 0.025
    %vm217 = vcmp.eq.s32.totalorder %v204, 5
    %v218 = vsel %vm217, %v200, 0.0
    %219 = vadd.xlane.f32.xlu0 %v218
    %v220 = vpop.xlane.xlu0 %219
    %v221 = vstv %s216
    %v222 = vsub.f32 %v220, %v221
    %v223 = vadd.f32 %v200, %v222
    %224 = vst [vmem:[#allocation7] sm:$0xff] %v223
    // Predicated region
    $region18: #{tpu_custom_call.1} parent=1 // pred_check
      _
    $region19: #{tpu_custom_call.1} parent=1 // pred_check_branch
      %226 = sbr.rel (0) target = $region21
    $region20: #{tpu_custom_call.1} parent=1 // pred_region
      %s228 = ssub.s32 128, 128
      %229 = vsyncadd [#allocation4], %s228
      %s231 = sshll.u32 [#allocation7], 4
      %s232 = int_to_ptr.vmem [resolvable:$true] %s231
      %234 = dma.vmem_to_hbm [thread:$0]  %s232, 128, %s2, [#allocation4]
    $region21: #{tpu_custom_call.1} parent=1 // pred_fallthru
      _
    // Predicated region
    $region22: #{tpu_custom_call.1} parent=1 // pred_check
      _
    $region23: #{tpu_custom_call.1} parent=1 // pred_check_branch
      %236 = sbr.rel (0) target = $region25
    $region24: #{tpu_custom_call.1} parent=1 // pred_region
      %237 = dma.done [#allocation4], 128
    $region25: #{tpu_custom_call.1} parent=1 // pred_fallthru
      _
    %238 = vsyncpa [#allocation3], 1
    %239 = vsyncpa [#allocation6], 1
    %240 = vsyncpa [#allocation4], 1

</llo_original>
